<compile_context>
chip_gen: v6e
topology: v6e:2x2x1
jax: 0.10.0
libtpu: 0.0.40
codegen_flags: <defaults>
</compile_context>

<pallas_src>
import functools

import jax
import jax.numpy as jnp
from jax.experimental import pallas as pl
from jax.experimental.pallas import tpu as pltpu

_LANES = 128
_SMOOTH = 1e-10            # same smoothing constant as the PyTorch module
_BATCH_GRID_THRESHOLD = 16  # B >= this -> batch becomes its own grid axis


@functools.lru_cache(maxsize=None)
def _chip_gen():
    """Best-effort TPU generation detection (trace-time only, never fatal)."""
    try:
        kind = jax.devices()[0].device_kind.lower()
    except Exception:
        return "unknown"
    if "v5 lite" in kind or "v5e" in kind or "v5lite" in kind:
        return "v5e"
    if "v6" in kind:
        return "v6e"
    if "7" in kind:
        return "v7x"
    return "unknown"


def _gen_budget(gen):
    """(per-input target block bytes, vmem_limit_bytes) per TPU generation."""
    if gen == "v6e":   # 128 MiB physical VMEM, ~1.4 TB/s HBM
        return 8 * 1024 * 1024, 64 << 20
    if gen == "v7x":   # 64 MiB physical VMEM per TC, 3.2 TB/s HBM
        return 4 * 1024 * 1024, 32 << 20
    if gen == "v5e":   # 128 MiB physical VMEM, ~0.8 TB/s HBM
        return 4 * 1024 * 1024, 32 << 20
    return 2 * 1024 * 1024, 32 << 20


def _dice_kernel(p_ref, t_ref, num_ref, den_ref, *, rows, tile_r, g_inner,
                 full_blocks, needs_mask, outer_is_rowsplit):
    i = pl.program_id(1)  # reduction (row-block) axis, always last

    @pl.when(i == 0)
    def _init():
        num_ref[...] = jnp.zeros_like(num_ref)
        den_ref[...] = jnp.zeros_like(den_ref)

    p = p_ref[...].astype(jnp.float32)   # (bblk, tile_r, 128), upcast in-regs
    t = t_ref[...].astype(jnp.float32)

    if not needs_mask:
        num_ref[...] += jnp.sum(p * t, axis=1)
        den_ref[...] += jnp.sum(p + t, axis=1)
        return

    # Global row-block index (unclamped; index_map may clamp separately).
    if outer_is_rowsplit:
        blk = pl.program_id(0) * g_inner + i
    else:
        blk = i
    is_tail = blk >= full_blocks

    @pl.when(jnp.logical_not(is_tail))
    def _full_block():  # unmasked fast path for all full blocks
        num_ref[...] += jnp.sum(p * t, axis=1)
        den_ref[...] += jnp.sum(p + t, axis=1)

    @pl.when(is_tail)
    def _tail_block():  # masked path, only on the tail / padded block(s)
        row = jax.lax.broadcasted_iota(jnp.int32, p.shape, 1)
        valid = (blk * tile_r + row) < rows
        pm = jnp.where(valid, p, 0.0)
        tm = jnp.where(valid, t, 0.0)
        num_ref[...] += jnp.sum(pm * tm, axis=1)
        den_ref[...] += jnp.sum(pm + tm, axis=1)


def _dice_sums(predict, target):
    """Per-batch (num, den) sums via a Pallas HBM-streaming reduction."""
    b = predict.shape[0]
    n = 1
    for d in predict.shape[1:]:
        n *= int(d)

    p2 = jnp.reshape(predict, (b, n))
    t2 = jnp.reshape(target, (b, n))

    # Rare case only: pad the feature axis by <128 zeros per row (zeros do not
    # change any of the sums).
    n_pad = (-n) % _LANES
    if n_pad:
        p2 = jnp.pad(p2, ((0, 0), (0, n_pad)))
        t2 = jnp.pad(t2, ((0, 0), (0, n_pad)))
    rows = (n + n_pad) // _LANES

    p3 = jnp.reshape(p2, (b, rows, _LANES))
    t3 = jnp.reshape(t2, (b, rows, _LANES))

    gen = _chip_gen()
    per_input_bytes, vmem_limit = _gen_budget(gen)

    p_item = jnp.dtype(predict.dtype).itemsize
    t_item = jnp.dtype(target.dtype).itemsize
    # dtype-native sublane packing: 8 rows (32-bit), 16 (16-bit), 32 (8-bit).
    packing = 8 * max(1, 4 // min(p_item, t_item))
    row_bytes = _LANES * (p_item + t_item)        # one (1,128) row, both inputs

    batch_in_grid = b >= _BATCH_GRID_THRESHOLD
    bblk = 1 if batch_in_grid else b

    target_step_bytes = 2 * per_input_bytes       # both inputs per grid step
    tile_r = target_step_bytes // (bblk * row_bytes)
    tile_r = max(packing, (tile_r // packing) * packing)
    if tile_r >= rows:
        tile_r = rows                             # single full-extent block
    tile_r = int(tile_r)

    num_blocks = pl.cdiv(rows, tile_r)
    full_blocks = rows // tile_r

    if batch_in_grid:
        # Per-batch contiguous tiles: grid = (B, row_blocks).  The batch axis
        # is "parallel" (megacore-shardable), the reduction axis is last.
        g_inner = num_blocks
        needs_mask = (g_inner * tile_r) != rows
        grid = (b, g_inner)
        in_spec = pl.BlockSpec((1, tile_r, _LANES), lambda bi, i: (bi, i, 0))
        part_shape = jax.ShapeDtypeStruct((b, 1, _LANES), jnp.float32)
        part_spec = pl.BlockSpec((None, 1, _LANES), lambda bi, i: (bi, 0, 0))
        outer_is_rowsplit = False
    else:
        # Small batch: whole batch in the block; on v7x split row-blocks
        # across an outer parallel axis (one partial slab per outer block).
        g_outer = 2 if (gen == "v7x" and num_blocks >= 2) else 1
        g_inner = pl.cdiv(num_blocks, g_outer)
        padded = (g_outer * g_inner) > num_blocks
        needs_mask = (g_outer * g_inner * tile_r) != rows
        grid = (g_outer, g_inner)
        if padded:
            # Keep DMAs in-bounds on the padded iteration; its contribution is
            # zeroed by the (unclamped-index) mask in the kernel.
            def in_index(o, i):
                return (0, jnp.minimum(o * g_inner + i, num_blocks - 1), 0)
        else:
            def in_index(o, i):
                return (0, o * g_inner + i, 0)
        in_spec = pl.BlockSpec((b, tile_r, _LANES), in_index)
        part_shape = jax.ShapeDtypeStruct((g_outer, b, _LANES), jnp.float32)
        part_spec = pl.BlockSpec((None, b, _LANES), lambda o, i: (o, 0, 0))
        outer_is_rowsplit = True

    kernel = functools.partial(
        _dice_kernel, rows=rows, tile_r=tile_r, g_inner=g_inner,
        full_blocks=full_blocks, needs_mask=needs_mask,
        outer_is_rowsplit=outer_is_rowsplit)

    num_part, den_part = pl.pallas_call(
        kernel,
        out_shape=(part_shape, part_shape),
        grid_spec=pltpu.PrefetchScalarGridSpec(
            num_scalar_prefetch=0,
            grid=grid,
            in_specs=[in_spec, in_spec],
            out_specs=[part_spec, part_spec],
        ),
        compiler_params=pltpu.CompilerParams(
            dimension_semantics=("parallel", "arbitrary"),
            vmem_limit_bytes=vmem_limit,
        ),
    )(p3, t3)

    # Tiny finalize on the lane partials in XLA.
    if batch_in_grid:
        num = jnp.sum(num_part, axis=(1, 2))   # (B,)
        den = jnp.sum(den_part, axis=(1, 2))   # (B,)
    else:
        num = jnp.sum(num_part, axis=(0, 2))   # (B,)
        den = jnp.sum(den_part, axis=(0, 2))   # (B,)
    return num, den


@jax.jit
def binary_dice_loss(predict, target):
    assert predict.shape == target.shape
    num, den = _dice_sums(predict, target)
    loss = 1.0 - (2.0 * num + _SMOOTH) / (den + _SMOOTH)
    return jnp.mean(loss)


def _reference(predict, target):
    b = predict.shape[0]
    p = jnp.reshape(predict, (b, -1)).astype(jnp.float32)
    t = jnp.reshape(target, (b, -1)).astype(jnp.float32)
    num = jnp.sum(p * t, axis=1)
    den = jnp.sum(p, axis=1) + jnp.sum(t, axis=1)
    loss = 1.0 - (2.0 * num + 1e-10) / (den + 1e-10)
    return jnp.mean(loss)


if __name__ == "__main__":
    key = jax.random.PRNGKey(0)
    k1, k2 = jax.random.split(key)
    # predictions in [0, 1], binary targets — typical dice-loss inputs (NCHW)
    predict = jax.nn.sigmoid(jax.random.normal(k1, (2, 4, 16, 16), jnp.float32))
    target = (jax.random.uniform(k2, (2, 4, 16, 16)) > 0.5).astype(jnp.float32)

    out = binary_dice_loss(predict, target)
    out = jax.block_until_ready(out)

    ref = _reference(predict, target)
    assert jnp.allclose(out, ref, rtol=1e-5, atol=1e-6), (out, ref)
    print("KERNEL_OK")
</pallas_src>

<mosaic_0001>
module attributes {stable_mosaic.version = 11 : i64} {
  func.func @_dice_kernel(%arg0: i32, %arg1: i32, %arg2: memref<2x8x128xf32, #tpu.memory_space<vmem>>, %arg3: memref<2x8x128xf32, #tpu.memory_space<vmem>>, %arg4: memref<1x2x128xf32, #tpu.memory_space<vmem>>, %arg5: memref<1x2x128xf32, #tpu.memory_space<vmem>>) attributes {dimension_semantics = [#tpu.dimension_semantics<parallel>, #tpu.dimension_semantics<arbitrary>], iteration_bounds = array<i64: 1, 1>, scalar_prefetch = 0 : i64, scratch_operands = 0 : i64, tpu.core_type = #tpu.core_type<tc>, window_params = [{transform_indices = @transform_0, window_bounds = array<i64: 2, 8, 128>}, {transform_indices = @transform_1, window_bounds = array<i64: 2, 8, 128>}, {transform_indices = @transform_2, window_bounds = array<i64: 1, 2, 128>}, {transform_indices = @transform_3, window_bounds = array<i64: 1, 2, 128>}]} {
    %c0_i32 = arith.constant 0 : i32
    %0 = arith.cmpi eq, %arg1, %c0_i32 : i32
    %1 = arith.extui %0 : i1 to i32
    %c0_i32_0 = arith.constant 0 : i32
    %2 = arith.cmpi ne, %1, %c0_i32_0 : i32
    scf.if %2 {
      %cst_19 = arith.constant 0.000000e+00 : f32
      %21 = vector.broadcast %cst_19 : f32 to vector<2x128xf32>
      %c0_20 = arith.constant 0 : index
      %c0_21 = arith.constant 0 : index
      %c0_22 = arith.constant 0 : index
      %22 = vector.load %arg4[%c0_20, %c0_21, %c0_22] : memref<1x2x128xf32, #tpu.memory_space<vmem>>, vector<1x2x128xf32>
      %23 = vector.shape_cast %22 : vector<1x2x128xf32> to vector<2x128xf32>
      %24 = vector.shape_cast %21 : vector<2x128xf32> to vector<1x2x128xf32>
      tpu.vector_store %arg4[%c0_20, %c0_21, %c0_22], %24 {strides = array<i32>} : memref<1x2x128xf32, #tpu.memory_space<vmem>>, vector<1x2x128xf32>,
      %cst_23 = arith.constant 0.000000e+00 : f32
      %25 = vector.broadcast %cst_23 : f32 to vector<2x128xf32>
      %c0_24 = arith.constant 0 : index
      %c0_25 = arith.constant 0 : index
      %c0_26 = arith.constant 0 : index
      %26 = vector.load %arg5[%c0_24, %c0_25, %c0_26] : memref<1x2x128xf32, #tpu.memory_space<vmem>>, vector<1x2x128xf32>
      %27 = vector.shape_cast %26 : vector<1x2x128xf32> to vector<2x128xf32>
      %28 = vector.shape_cast %25 : vector<2x128xf32> to vector<1x2x128xf32>
      tpu.vector_store %arg5[%c0_24, %c0_25, %c0_26], %28 {strides = array<i32>} : memref<1x2x128xf32, #tpu.memory_space<vmem>>, vector<1x2x128xf32>,
    } else {
    }
    %c0 = arith.constant 0 : index
    %c0_1 = arith.constant 0 : index
    %c0_2 = arith.constant 0 : index
    %3 = vector.load %arg2[%c0, %c0_1, %c0_2] : memref<2x8x128xf32, #tpu.memory_space<vmem>>, vector<2x8x128xf32>
    %c0_3 = arith.constant 0 : index
    %c0_4 = arith.constant 0 : index
    %c0_5 = arith.constant 0 : index
    %4 = vector.load %arg3[%c0_3, %c0_4, %c0_5] : memref<2x8x128xf32, #tpu.memory_space<vmem>>, vector<2x8x128xf32>
    %c0_6 = arith.constant 0 : index
    %c0_7 = arith.constant 0 : index
    %c0_8 = arith.constant 0 : index
    %5 = vector.load %arg4[%c0_6, %c0_7, %c0_8] : memref<1x2x128xf32, #tpu.memory_space<vmem>>, vector<1x2x128xf32>
    %6 = vector.shape_cast %5 : vector<1x2x128xf32> to vector<2x128xf32>
    %7 = arith.mulf %3, %4 : vector<2x8x128xf32>
    %cst = arith.constant dense<0.000000e+00> : vector<2x128xf32>
    %8 = vector.multi_reduction <add>, %7, %cst [1] : vector<2x8x128xf32> to vector<2x128xf32>
    %9 = arith.addf %6, %8 : vector<2x128xf32>
    %c0_9 = arith.constant 0 : index
    %c0_10 = arith.constant 0 : index
    %c0_11 = arith.constant 0 : index
    %10 = vector.load %arg4[%c0_9, %c0_10, %c0_11] : memref<1x2x128xf32, #tpu.memory_space<vmem>>, vector<1x2x128xf32>
    %11 = vector.shape_cast %10 : vector<1x2x128xf32> to vector<2x128xf32>
    %12 = vector.shape_cast %9 : vector<2x128xf32> to vector<1x2x128xf32>
    tpu.vector_store %arg4[%c0_9, %c0_10, %c0_11], %12 {strides = array<i32>} : memref<1x2x128xf32, #tpu.memory_space<vmem>>, vector<1x2x128xf32>,
    %c0_12 = arith.constant 0 : index
    %c0_13 = arith.constant 0 : index
    %c0_14 = arith.constant 0 : index
    %13 = vector.load %arg5[%c0_12, %c0_13, %c0_14] : memref<1x2x128xf32, #tpu.memory_space<vmem>>, vector<1x2x128xf32>
    %14 = vector.shape_cast %13 : vector<1x2x128xf32> to vector<2x128xf32>
    %15 = arith.addf %3, %4 : vector<2x8x128xf32>
    %cst_15 = arith.constant dense<0.000000e+00> : vector<2x128xf32>
    %16 = vector.multi_reduction <add>, %15, %cst_15 [1] : vector<2x8x128xf32> to vector<2x128xf32>
    %17 = arith.addf %14, %16 : vector<2x128xf32>
    %c0_16 = arith.constant 0 : index
    %c0_17 = arith.constant 0 : index
    %c0_18 = arith.constant 0 : index
    %18 = vector.load %arg5[%c0_16, %c0_17, %c0_18] : memref<1x2x128xf32, #tpu.memory_space<vmem>>, vector<1x2x128xf32>
    %19 = vector.shape_cast %18 : vector<1x2x128xf32> to vector<2x128xf32>
    %20 = vector.shape_cast %17 : vector<2x128xf32> to vector<1x2x128xf32>
    tpu.vector_store %arg5[%c0_16, %c0_17, %c0_18], %20 {strides = array<i32>} : memref<1x2x128xf32, #tpu.memory_space<vmem>>, vector<1x2x128xf32>,
    return
  }
  func.func @transform_0(%arg0: i32, %arg1: i32) -> (i32, i32, i32) {
    %c1_i32 = arith.constant 1 : i32
    %0 = arith.muli %arg0, %c1_i32 : i32
    %1 = arith.addi %0, %arg1 : i32
    %c0_i32 = arith.constant 0 : i32
    %c0_i32_0 = arith.constant 0 : i32
    %c0_i32_1 = arith.constant 0 : i32
    return %c0_i32, %1, %c0_i32_0 : i32, i32, i32
  }
  func.func @transform_1(%arg0: i32, %arg1: i32) -> (i32, i32, i32) {
    %c1_i32 = arith.constant 1 : i32
    %0 = arith.muli %arg0, %c1_i32 : i32
    %1 = arith.addi %0, %arg1 : i32
    %c0_i32 = arith.constant 0 : i32
    %c0_i32_0 = arith.constant 0 : i32
    %c0_i32_1 = arith.constant 0 : i32
    return %c0_i32, %1, %c0_i32_0 : i32, i32, i32
  }
  func.func @transform_2(%arg0: i32, %arg1: i32) -> (i32, i32, i32) {
    %c0_i32 = arith.constant 0 : i32
    %c0_i32_0 = arith.constant 0 : i32
    %c0_i32_1 = arith.constant 0 : i32
    return %arg0, %c0_i32, %c0_i32_0 : i32, i32, i32
  }
  func.func @transform_3(%arg0: i32, %arg1: i32) -> (i32, i32, i32) {
    %c0_i32 = arith.constant 0 : i32
    %c0_i32_0 = arith.constant 0 : i32
    %c0_i32_1 = arith.constant 0 : i32
    return %arg0, %c0_i32, %c0_i32_0 : i32, i32, i32
  }
}

</mosaic_0001>

<llo_original>
// kernel: binary_dice_loss.1
$region0: #{binary_dice_loss.1}
  #allocation0 [shape = 'u32[]', space=smem, size = 0x4, offset = 0x4, fixed_abs, tag = 'smem constant byte address 0x4 - core index']
  #allocation1 [shape = 'u32[144,128]{1,0:T(1,128)}', space=vmem, size = 0x12000, scoped, tag = 'internal scratch']
  %s0 = inlined_call_operand.vmem [shape: f32[2,8,128], index: 0, kind: input, shape index: {}]
  %s1 = inlined_call_operand.vmem [shape: f32[2,8,128], index: 1, kind: input, shape index: {}]
  %s2 = inlined_call_operand.vmem [shape: f32[1,2,128], index: 2, kind: output, shape index: {0}]
  %s3 = inlined_call_operand.vmem [shape: f32[1,2,128], index: 3, kind: output, shape index: {1}]
  %4 = xla_tuple %s2, %s3
  %s5 = sld [smem:[#allocation0]]
  $region30: #{binary_dice_loss.1} parent=0
    _
  %s7 = ssub.s32 1, %s5
  %s8 = scalar_select 0, %s7, %s5
  // Predicated region
  $region2: #{binary_dice_loss.1} parent=0 // pred_check
    _
  $region3: #{binary_dice_loss.1} parent=0 // pred_check_branch
    %10 = sbr.rel (0) target = $region5
  $region4: #{binary_dice_loss.1} parent=0 // pred_region
    %s11 = sadd.s32 0, 0
    %p12 = scmp.lt.s32.totalorder %s11, 0
    %s13 = scalar_select %p12, %s11, 0
    %s14 = smul.addr %s13, 8
    %s15 = scalar_lea.vmem %s0, %s14
    %s16 = sadd.s32 0, 0
  $region5: #{binary_dice_loss.1} parent=0 // pred_fallthru
    _
  // Predicated region
  $region6: #{binary_dice_loss.1} parent=0 // pred_check
    _
  $region7: #{binary_dice_loss.1} parent=0 // pred_check_branch
    %18 = sbr.rel (0) target = $region9
  $region8: #{binary_dice_loss.1} parent=0 // pred_region
    %s19 = sadd.s32 0, 0
    %p20 = scmp.lt.s32.totalorder %s19, 0
    %s21 = scalar_select %p20, %s19, 0
    %s22 = smul.addr %s21, 8
    %s23 = scalar_lea.vmem %s1, %s22
    %s24 = sadd.s32 0, 0
  $region9: #{binary_dice_loss.1} parent=0 // pred_fallthru
    _
  %s25 = sadd.s32 0, 0
  %p26 = scmp.lt.s32.totalorder %s25, 0
  %s27 = scalar_select %p26, %s25, 0
  %s28 = smul.addr %s27, 8
  %s29 = scalar_lea.vmem %s0, %s28
  %s30 = sadd.s32 0, 0
  %p31 = scmp.lt.s32.totalorder %s30, 0
  %s32 = scalar_select %p31, %s30, 0
  %s33 = smul.addr %s32, 8
  %s34 = scalar_lea.vmem %s1, %s33
  %s35 = sadd.s32 0, 0
  %p36 = scmp.lt.s32.totalorder %s35, 0
  %s37 = scalar_select %p36, %s35, 0
  %s38 = smul.addr %s37, 8
  %s39 = scalar_lea.vmem %s0, %s38
  %s40 = sadd.s32 0, 0
  %s41 = sadd.s32 0, 0
  %p42 = scmp.lt.s32.totalorder %s41, 0
  %s43 = scalar_select %p42, %s41, 0
  %s44 = smul.addr %s43, 8
  %s45 = scalar_lea.vmem %s1, %s44
  %s46 = sadd.s32 0, 0
  %p47 = scmp.eq.s32.totalorder 0, 0
  // Predicated region
  $region10: #{binary_dice_loss.1} parent=0 // pred_check
    %p48 = pneg %p47
  $region11: #{binary_dice_loss.1} parent=0 // pred_check_branch
    %50 = sbr.rel (%p48) target = $region13
  $region12: #{binary_dice_loss.1} parent=0 // pred_region
    %51 = vst [vmem:[%s2] sm:$0x3] 0.0
    %52 = vst [vmem:[%s3] sm:$0x3] 0.0
  $region13: #{binary_dice_loss.1} parent=0 // pred_fallthru
    _
  %v53 = vld [vmem:[%s39] sm:$0xff]
  %v54 = vld [vmem:[%s39 + $0x8] sm:$0xff]
  %v55 = vld [vmem:[%s45] sm:$0xff]
  %v56 = vld [vmem:[%s45 + $0x8] sm:$0xff]
  %v57 = vld [vmem:[%s2] sm:$0x3]
  %v58 = vmul.f32 %v53, %v55
  %v59 = vmul.f32 %v54, %v56
  %v60 = vrot.slane %v58, 4
  %v61 = vadd.f32 %v58, %v60
  %v62 = vrot.slane %v61, 2
  %v63 = vadd.f32 %v61, %v62
  %v64 = vrot.slane %v63, 1
  %v65 = vadd.f32 %v63, %v64
  %v66 = vrot.slane %v59, 4
  %v67 = vadd.f32 %v59, %v66
  %v68 = vrot.slane %v67, 2
  %v69 = vadd.f32 %v67, %v68
  %v70 = vrot.slane %v69, 1
  %v71 = vadd.f32 %v69, %v70
  %vm74 = vcmask 1041409
  %v75 = vsel %vm74, %v71, %v65
  %v77 = vadd.f32 %v57, %v75
  %78 = vst [vmem:[%s2] sm:$0x3] %v77
  %v79 = vld [vmem:[%s3] sm:$0x3]
  %v80 = vadd.f32 %v53, %v55
  %v81 = vadd.f32 %v54, %v56
  %v82 = vrot.slane %v80, 4
  %v83 = vadd.f32 %v80, %v82
  %v84 = vrot.slane %v83, 2
  %v85 = vadd.f32 %v83, %v84
  %v86 = vrot.slane %v85, 1
  %v87 = vadd.f32 %v85, %v86
  %v88 = vrot.slane %v81, 4
  %v89 = vadd.f32 %v81, %v88
  %v90 = vrot.slane %v89, 2
  %v91 = vadd.f32 %v89, %v90
  %v92 = vrot.slane %v91, 1
  %v93 = vadd.f32 %v91, %v92
  %v96 = vsel %vm74, %v93, %v87
  %v98 = vadd.f32 %v79, %v96
  %99 = vst [vmem:[%s3] sm:$0x3] %v98
  // Predicated region
  $region14: #{binary_dice_loss.1} parent=0 // pred_check
    _
  $region15: #{binary_dice_loss.1} parent=0 // pred_check_branch
    %101 = sbr.rel (0) target = $region17
  $region16: #{binary_dice_loss.1} parent=0 // pred_region
    _
  $region17: #{binary_dice_loss.1} parent=0 // pred_fallthru
    _
  // Predicated region
  $region18: #{binary_dice_loss.1} parent=0 // pred_check
    _
  $region19: #{binary_dice_loss.1} parent=0 // pred_check_branch
    %103 = sbr.rel (0) target = $region21
  $region20: #{binary_dice_loss.1} parent=0 // pred_region
    _
  $region21: #{binary_dice_loss.1} parent=0 // pred_fallthru
    _
  // Predicated region
  $region22: #{binary_dice_loss.1} parent=0 // pred_check
    _
  $region23: #{binary_dice_loss.1} parent=0 // pred_check_branch
    %105 = sbr.rel (0) target = $region25
  $region24: #{binary_dice_loss.1} parent=0 // pred_region
    _
  $region25: #{binary_dice_loss.1} parent=0 // pred_fallthru
    _
  // Predicated region
  $region26: #{binary_dice_loss.1} parent=0 // pred_check
    _
  $region27: #{binary_dice_loss.1} parent=0 // pred_check_branch
    %107 = sbr.rel (0) target = $region29
  $region28: #{binary_dice_loss.1} parent=0 // pred_region
    _
  $region29: #{binary_dice_loss.1} parent=0 // pred_fallthru
    _

</llo_original>
